<compile_context>
chip_gen: v5e
topology: v5e:2x2
jax: 0.10.0
libtpu: 0.0.40
codegen_flags: <defaults>
</compile_context>

<pallas_src>
import jax
import jax.numpy as jnp
from jax.experimental import pallas as pl
from jax.experimental.pallas import tpu as pltpu


def _time_embedding_kernel(x_ref, w1_ref, b1_ref, w2_ref, b2_ref, o_ref):
    # linear_1 + SiLU, recomputed per column block (x/w1/b1 blocks are constant
    # across the grid so they are fetched once; the extra MXU/VPU work is
    # hidden under the w2 DMA which dominates).
    h = jnp.dot(x_ref[...].astype(w1_ref.dtype), w1_ref[...],
                preferred_element_type=jnp.float32)
    h = h + b1_ref[...]                      # fp32 bias add
    h = h * jax.nn.sigmoid(h)                # fp32 SiLU (EUP sigmoid)

    # linear_2 on the current column block of w2: (B, 4n) @ (4n, TILE_N)
    out = jnp.dot(h.astype(w2_ref.dtype), w2_ref[...],
                  preferred_element_type=jnp.float32)
    out = out + b2_ref[...]                  # fp32 bias add
    o_ref[...] = out.astype(o_ref.dtype)


def _vmem_capacity_bytes() -> int:
    """Physical VMEM of the current chip, with a conservative fallback."""
    try:
        cap = int(pltpu.get_tpu_info().vmem_capacity_bytes)
        if cap > 0:
            return cap
    except Exception:
        pass
    return 64 << 20  # v7x per-TC VMEM — the smallest of current generations.


def _pick_tile_n(n4: int, w_itemsize: int, w2_budget_bytes: int,
                 buffers: int) -> int:
    """Largest multiple-of-128 divisor of n4, capped at n4//2 (keeps >=2 grid
    steps for pipelining / dual-TC split) and bounded so the `buffers`-deep
    w2 column block fits its VMEM budget."""
    if n4 % 128 != 0:
        return n4                      # tiny/odd sizes: single full-width block
    cap = max(n4 // 2, 128)
    best = 128
    t = 128
    while t <= cap:
        if n4 % t == 0 and buffers * n4 * t * w_itemsize <= w2_budget_bytes:
            best = t
        t += 128
    return best


def time_embedding(x, w1, b1, w2, b2, *, tile_n=None, w2_buffers=3):
    """x: (B, n_embed); w1: (n_embed, 4n); w2: (4n, 4n); b1/b2: (4n,) or (1, 4n).

    Weights are stored transposed vs. PyTorch, i.e. (in_features, out_features),
    so the kernel does plain `x @ W + b`.
    """
    B, n = x.shape
    n4 = w1.shape[1]
    assert w1.shape == (n, n4)
    assert w2.shape == (n4, n4)
    b1 = jnp.asarray(b1).reshape(1, n4)      # accept PyTorch-style (4n,) biases
    b2 = jnp.asarray(b2).reshape(1, n4)

    # Pad batch up to a multiple of 8 sublanes (full-sublane stores, better MXU
    # row utilisation) and pre-cast x to the weight dtype once.
    Bp = max(8, ((B + 7) // 8) * 8)
    x_p = jnp.zeros((Bp, n), w1.dtype).at[:B, :].set(x.astype(w1.dtype))

    cap = _vmem_capacity_bytes()
    vmem_budget = int(0.85 * cap)            # leave room for Mosaic scratch
    w_isz = jnp.dtype(w2.dtype).itemsize

    if tile_n is None:
        tile_n = _pick_tile_n(n4, w_isz, vmem_budget // 2, w2_buffers)
    tile_n = min(tile_n, n4)
    assert n4 % tile_n == 0, "4*n_embed must be divisible by tile_n"
    grid = (n4 // tile_n,)

    # VMEM footprint: assume Pallas may double-buffer even constant-index
    # blocks; w2/b2 are `w2_buffers`-deep; plus the fp32 h intermediate.
    isz = lambda a: jnp.dtype(a.dtype).itemsize
    footprint = (
        2 * x_p.size * isz(x_p)                       # x block
        + 2 * w1.size * isz(w1)                       # w1
        + 2 * b1.size * isz(b1)                       # b1
        + w2_buffers * (n4 * tile_n) * isz(w2)        # w2 column blocks
        + w2_buffers * tile_n * isz(b2)               # b2 slices
        + 2 * (Bp * tile_n) * isz(x)                  # out blocks
        + Bp * n4 * 4                                 # fp32 h intermediate
    )
    vmem_limit = int(min(max(2 * footprint + (4 << 20), 16 << 20), vmem_budget))

    out_shape = jax.ShapeDtypeStruct((Bp, n4), x.dtype)

    def run(buffered: bool):
        w2_spec = pl.BlockSpec((n4, tile_n), lambda j: (0, j))
        b2_spec = pl.BlockSpec((1, tile_n), lambda j: (0, j))
        if buffered and hasattr(pl, "Buffered"):
            try:
                w2_spec = pl.BlockSpec((n4, tile_n), lambda j: (0, j),
                                       pipeline_mode=pl.Buffered(w2_buffers))
                b2_spec = pl.BlockSpec((1, tile_n), lambda j: (0, j),
                                       pipeline_mode=pl.Buffered(w2_buffers))
            except TypeError:
                pass
        return pl.pallas_call(
            _time_embedding_kernel,
            out_shape=out_shape,
            grid=grid,
            in_specs=[
                pl.BlockSpec((Bp, n), lambda j: (0, 0)),        # x   (resident)
                pl.BlockSpec((n, n4), lambda j: (0, 0)),        # w1  (resident)
                pl.BlockSpec((1, n4), lambda j: (0, 0)),        # b1  (resident)
                w2_spec,                                        # w2 column block
                b2_spec,                                        # b2 slice
            ],
            out_specs=pl.BlockSpec((Bp, tile_n), lambda j: (0, j)),
            compiler_params=pltpu.CompilerParams(
                dimension_semantics=("parallel",),              # megacore-shardable
                vmem_limit_bytes=vmem_limit,
            ),
        )(x_p, w1, b1, w2, b2)

    try:
        out_p = jax.block_until_ready(run(buffered=True))
    except Exception:
        # Fallback to the previously-validated default 2-deep pipeline.
        out_p = run(buffered=False)

    return out_p[:B, :]


def init_params(key, n_embed, weight_dtype=jnp.bfloat16, bias_dtype=jnp.float32):
    """Deterministic init mimicking nn.Linear defaults: U(-1/sqrt(fan_in), +).

    Weights are returned already transposed to (in, out) and cast to bf16
    (halves the HBM weight stream; MXU accumulates in fp32).  Biases stay fp32
    and use the PyTorch (4n,) layout.
    """
    n4 = 4 * n_embed
    k1, k2, k3, k4 = jax.random.split(key, 4)
    bound1 = 1.0 / jnp.sqrt(n_embed)
    bound2 = 1.0 / jnp.sqrt(n4)
    w1 = jax.random.uniform(k1, (n_embed, n4), jnp.float32, -bound1, bound1)
    b1 = jax.random.uniform(k2, (n4,), jnp.float32, -bound1, bound1)
    w2 = jax.random.uniform(k3, (n4, n4), jnp.float32, -bound2, bound2)
    b2 = jax.random.uniform(k4, (n4,), jnp.float32, -bound2, bound2)
    return (w1.astype(weight_dtype), b1.astype(bias_dtype),
            w2.astype(weight_dtype), b2.astype(bias_dtype))


def time_embedding_ref(x, w1, b1, w2, b2):
    """Pure-JAX reference with the same dtype discipline as the kernel."""
    h = jnp.dot(x.astype(w1.dtype), w1, preferred_element_type=jnp.float32)
    h = h + b1.reshape(1, -1)
    h = h * jax.nn.sigmoid(h)
    out = jnp.dot(h.astype(w2.dtype), w2, preferred_element_type=jnp.float32)
    return out + b2.reshape(1, -1)


if __name__ == "__main__":
    n_embed = 64          # hidden = 4*n_embed = 256 -> auto tile_n=128, grid=(2,)
    batch = 2

    key = jax.random.PRNGKey(0)
    kx, kp = jax.random.split(key)
    x = jax.random.normal(kx, (batch, n_embed), jnp.float32)
    w1, b1, w2, b2 = init_params(kp, n_embed)

    out = time_embedding(x, w1, b1, w2, b2)
    out = jax.block_until_ready(out)

    ref = time_embedding_ref(x, w1, b1, w2, b2).astype(out.dtype)
    assert out.shape == (batch, 4 * n_embed)
    assert jnp.allclose(out, ref, atol=2e-3, rtol=2e-3), "mismatch vs JAX reference"

    print("KERNEL_OK")
</pallas_src>

<mosaic_0001>
module attributes {stable_mosaic.version = 11 : i64} {
  func.func @_time_embedding_kernel(%arg0: i32, %arg1: memref<8x64xbf16, #tpu.memory_space<vmem>>, %arg2: memref<64x256xbf16, #tpu.memory_space<vmem>>, %arg3: memref<1x256xf32, #tpu.memory_space<vmem>>, %arg4: memref<256x128xbf16, #tpu.memory_space<vmem>>, %arg5: memref<1x128xf32, #tpu.memory_space<vmem>>, %arg6: memref<8x128xf32, #tpu.memory_space<vmem>>) attributes {dimension_semantics = [#tpu.dimension_semantics<parallel>], iteration_bounds = array<i64: 2>, scalar_prefetch = 0 : i64, scratch_operands = 0 : i64, tpu.core_type = #tpu.core_type<tc>, window_params = [{pipeline_mode = #tpu.pipeline_mode<synchronous>, transform_indices = @transform_0, window_bounds = array<i64: 8, 64>}, {pipeline_mode = #tpu.pipeline_mode<synchronous>, transform_indices = @transform_1, window_bounds = array<i64: 64, 256>}, {pipeline_mode = #tpu.pipeline_mode<synchronous>, transform_indices = @transform_2, window_bounds = array<i64: 1, 256>}, {transform_indices = @transform_3, window_bounds = array<i64: 256, 128>}, {transform_indices = @transform_4, window_bounds = array<i64: 1, 128>}, {transform_indices = @transform_5, window_bounds = array<i64: 8, 128>}]} {
    %c0 = arith.constant 0 : index
    %c0_0 = arith.constant 0 : index
    %0 = vector.load %arg1[%c0, %c0_0] : memref<8x64xbf16, #tpu.memory_space<vmem>>, vector<8x64xbf16>
    %c0_1 = arith.constant 0 : index
    %c0_2 = arith.constant 0 : index
    %1 = vector.load %arg2[%c0_1, %c0_2] : memref<64x256xbf16, #tpu.memory_space<vmem>>, vector<64x256xbf16>
    %cst = arith.constant dense<0.000000e+00> : vector<8x256xf32>
    %2 = tpu.matmul %0, %1, %cst {dimension_numbers = #tpu.dot_dimension_numbers<[1], [0], [0], [1], [0, 0, 1, 1], [], []>} : vector<8x64xbf16>, vector<64x256xbf16>, vector<8x256xf32> -> vector<8x256xf32>
    %c0_3 = arith.constant 0 : index
    %c0_4 = arith.constant 0 : index
    %3 = vector.load %arg3[%c0_3, %c0_4] : memref<1x256xf32, #tpu.memory_space<vmem>>, vector<1x256xf32>
    %4 = vector.broadcast %3 : vector<1x256xf32> to vector<8x256xf32>
    %5 = arith.addf %2, %4 : vector<8x256xf32>
    %6 = arith.negf %5 : vector<8x256xf32>
    %7 = math.exp %6 : vector<8x256xf32>
    %cst_5 = arith.constant 1.000000e+00 : f32
    %8 = vector.broadcast %cst_5 : f32 to vector<8x256xf32>
    %9 = arith.addf %8, %7 : vector<8x256xf32>
    %10 = arith.divf %8, %9 : vector<8x256xf32>
    %11 = arith.mulf %5, %10 : vector<8x256xf32>
    %12 = arith.truncf %11 : vector<8x256xf32> to vector<8x256xbf16>
    %c0_6 = arith.constant 0 : index
    %c0_7 = arith.constant 0 : index
    %13 = vector.load %arg4[%c0_6, %c0_7] : memref<256x128xbf16, #tpu.memory_space<vmem>>, vector<256x128xbf16>
    %cst_8 = arith.constant dense<0.000000e+00> : vector<8x128xf32>
    %14 = tpu.matmul %12, %13, %cst_8 {dimension_numbers = #tpu.dot_dimension_numbers<[1], [0], [0], [1], [0, 0, 1, 1], [], []>} : vector<8x256xbf16>, vector<256x128xbf16>, vector<8x128xf32> -> vector<8x128xf32>
    %c0_9 = arith.constant 0 : index
    %c0_10 = arith.constant 0 : index
    %15 = vector.load %arg5[%c0_9, %c0_10] : memref<1x128xf32, #tpu.memory_space<vmem>>, vector<1x128xf32>
    %16 = vector.broadcast %15 : vector<1x128xf32> to vector<8x128xf32>
    %17 = arith.addf %14, %16 : vector<8x128xf32>
    %c0_11 = arith.constant 0 : index
    %c0_12 = arith.constant 0 : index
    %18 = vector.load %arg6[%c0_11, %c0_12] : memref<8x128xf32, #tpu.memory_space<vmem>>, vector<8x128xf32>
    tpu.vector_store %arg6[%c0_11, %c0_12], %17 {strides = array<i32>} : memref<8x128xf32, #tpu.memory_space<vmem>>, vector<8x128xf32>,
    return
  }
  func.func @transform_0(%arg0: i32) -> (i32, i32) {
    %c0_i32 = arith.constant 0 : i32
    %c0_i32_0 = arith.constant 0 : i32
    %c0_i32_1 = arith.constant 0 : i32
    return %c0_i32, %c0_i32_0 : i32, i32
  }
  func.func @transform_1(%arg0: i32) -> (i32, i32) {
    %c0_i32 = arith.constant 0 : i32
    %c0_i32_0 = arith.constant 0 : i32
    %c0_i32_1 = arith.constant 0 : i32
    return %c0_i32, %c0_i32_0 : i32, i32
  }
  func.func @transform_2(%arg0: i32) -> (i32, i32) {
    %c0_i32 = arith.constant 0 : i32
    %c0_i32_0 = arith.constant 0 : i32
    %c0_i32_1 = arith.constant 0 : i32
    return %c0_i32, %c0_i32_0 : i32, i32
  }
  func.func @transform_3(%arg0: i32) -> (i32, i32) {
    %c0_i32 = arith.constant 0 : i32
    %c0_i32_0 = arith.constant 0 : i32
    return %c0_i32, %arg0 : i32, i32
  }
  func.func @transform_4(%arg0: i32) -> (i32, i32) {
    %c0_i32 = arith.constant 0 : i32
    %c0_i32_0 = arith.constant 0 : i32
    return %c0_i32, %arg0 : i32, i32
  }
  func.func @transform_5(%arg0: i32) -> (i32, i32) {
    %c0_i32 = arith.constant 0 : i32
    %c0_i32_0 = arith.constant 0 : i32
    return %c0_i32, %arg0 : i32, i32
  }
}

</mosaic_0001>

<llo_original>
// kernel: tpu_custom_call.1
$region0: #{tpu_custom_call.1}
  #allocation0 [shape = 'u32[]', space=smem, size = 0x4, offset = 0x4, fixed_abs, tag = 'smem constant byte address 0x4 - core index']
  #allocation1 [shape = 'u32[72,128]{1,0:T(1,128)}', space=vmem, size = 0x9000, scoped, tag = 'internal scratch']
  %s0 = inlined_call_operand.hbm [shape: bf16[8,64], index: 0, kind: input, shape index: {}]
  %s1 = inlined_call_operand.hbm [shape: bf16[64,256], index: 1, kind: input, shape index: {}]
  %s2 = inlined_call_operand.hbm [shape: f32[1,256], index: 2, kind: input, shape index: {}]
  %s3 = inlined_call_operand.hbm [shape: bf16[256,256], index: 3, kind: input, shape index: {}]
  %s4 = inlined_call_operand.vmem [shape: f32[1,256], index: 4, kind: input, shape index: {}]
  %s5 = inlined_call_operand.hbm [shape: f32[8,256], index: 5, kind: output, shape index: {}]
  %s6 = sld [smem:[#allocation0]]
  $region69: #{tpu_custom_call.1} parent=0
    _
  %s8 = ssub.s32 1, %s6
  %s9 = scalar_select 0, %s8, %s6
  $region1: #{tpu_custom_call.1} parent=0
    #allocation2 [shape = 'u8[2048]{0}', space=vmem, size = 0x800, scoped, tag = 'input window, operand 0, single buffered']
    #allocation3 [shape = 's32[2]{0}', space=sflag, size = 0x8, scoped, tag = 'scoped memory for tpu_custom_call.1']
    #allocation4 [shape = 's32[2]{0}', space=sflag, size = 0x8, scoped, tag = 'scoped memory for tpu_custom_call.1']
    #allocation5 [shape = 'u8[32768]{0}', space=vmem, size = 0x8000, scoped, tag = 'input window, operand 1, single buffered']
    #allocation6 [shape = 's32[1]{0}', space=sflag, size = 0x4, scoped, tag = 'scoped memory for tpu_custom_call.1']
    #allocation7 [shape = 'u8[1024]{0}', space=vmem, size = 0x400, scoped, tag = 'input window, operand 2, single buffered']
    #allocation8 [shape = 'u8[131072]{0}', space=vmem, size = 0x20000, scoped, tag = 'input window, operand 3']
    #allocation9 [shape = 's32[2]{0}', space=sflag, size = 0x8, scoped, tag = 'scoped memory for tpu_custom_call.1']
    #allocation10 [shape = 'u8[8192]{0}', space=vmem, size = 0x2000, scoped, tag = 'output window, operand 0']
    %10 = vsyncpa [#allocation3], 0
    %11 = vsyncpa [#allocation6], 0
    %12 = vsyncpa [#allocation9], 0
    %s13 = scalar_lea.sflag [#allocation9], 1
    %14 = vsyncpa %s13, 0
    %15 = vsyncpa [#allocation4], 0
    %s16 = scalar_lea.sflag [#allocation4], 1
    %17 = vsyncpa %s16, 0
    loop: start=0, step=1, limit=4
    $region2: #{tpu_custom_call.1} parent=1 // loop_pre_header
      _
    $region3: #{tpu_custom_call.1} parent=1 // loop_header
      %s19 = sphi 0, %s23
      %p20 = scmp.ge.s32.totalorder %s19, 4
      %s27 = sphi 0, %s27
      %s29 = sphi 0, %s27
      %s30 = sphi 0, %s29
      %s44 = sphi 0, %s30
      %s48 = sphi 0, %s48
      %s50 = sphi 0, %s48
      %s51 = sphi 0, %s50
      %s65 = sphi 0, %s51
      %s69 = sphi 0, %s69
      %s71 = sphi 0, %s69
      %s72 = sphi 0, %s71
      %s86 = sphi 0, %s72
      %s92 = sphi 0, %s94
      %s95 = sphi 0, %s92
      %s96 = sphi 0, %s95
      %s112 = sphi 0, %s96
      %s118 = sphi 0, %s120
      %s121 = sphi 0, %s118
      %s122 = sphi 0, %s121
      %s138 = sphi 0, %s122
      %s144 = sphi 0, %s146
      %s147 = sphi 0, %s144
      %s148 = sphi 0, %s147
      %s164 = sphi 0, %s148
    $region4: #{tpu_custom_call.1} parent=1 // loop_header_branch
      %22 = sbr.rel (%p20) target = $region8
    $region5: #{tpu_custom_call.1} parent=1 // loop_body
      %s24 = ssub.s32 %s19, 1
      %s25 = ssub.s32 %s19, 2
      %s26 = sadd.s32 %s19, 1
      %s28 = sadd.s32 %s27, 1
      %p31 = scmp.eq.s32.totalorder %s19, 1
      %p32 = scmp.ne.s32.totalorder %s27, %s29
      %p33 = scmp.eq.s32.totalorder %s19, 0
      %p34 = por %p32, %p33
      %p35 = scmp.ne.s32.totalorder %s27, %s29
      %p36 = scmp.eq.s32.totalorder %s24, 1
      %p37 = por %p35, %p36
      %p38 = scmp.ne.s32.totalorder %s29, %s30
      %p39 = scmp.eq.s32.totalorder %s24, 0
      %p40 = por %p38, %p39
      %p41 = scmp.ne.s32.totalorder %s29, %s30
      %p42 = scmp.eq.s32.totalorder %s25, 1
      %p43 = por %p41, %p42
      %p45 = scmp.ne.s32.totalorder %s30, %s44
      %p46 = scmp.eq.s32.totalorder %s25, 0
      %p47 = por %p45, %p46
      %s49 = sadd.s32 %s48, 1
      %p52 = scmp.eq.s32.totalorder %s19, 1
      %p53 = scmp.ne.s32.totalorder %s48, %s50
      %p54 = scmp.eq.s32.totalorder %s19, 0
      %p55 = por %p53, %p54
      %p56 = scmp.ne.s32.totalorder %s48, %s50
      %p57 = scmp.eq.s32.totalorder %s24, 1
      %p58 = por %p56, %p57
      %p59 = scmp.ne.s32.totalorder %s50, %s51
      %p60 = scmp.eq.s32.totalorder %s24, 0
      %p61 = por %p59, %p60
      %p62 = scmp.ne.s32.totalorder %s50, %s51
      %p63 = scmp.eq.s32.totalorder %s25, 1
      %p64 = por %p62, %p63
      %p66 = scmp.ne.s32.totalorder %s51, %s65
      %p67 = scmp.eq.s32.totalorder %s25, 0
      %p68 = por %p66, %p67
      %s70 = sadd.s32 %s69, 1
      %p73 = scmp.eq.s32.totalorder %s19, 1
      %p74 = scmp.ne.s32.totalorder %s69, %s71
      %p75 = scmp.eq.s32.totalorder %s19, 0
      %p76 = por %p74, %p75
      %p77 = scmp.ne.s32.totalorder %s69, %s71
      %p78 = scmp.eq.s32.totalorder %s24, 1
      %p79 = por %p77, %p78
      %p80 = scmp.ne.s32.totalorder %s71, %s72
      %p81 = scmp.eq.s32.totalorder %s24, 0
      %p82 = por %p80, %p81
      %p83 = scmp.ne.s32.totalorder %s71, %s72
      %p84 = scmp.eq.s32.totalorder %s25, 1
      %p85 = por %p83, %p84
      %p87 = scmp.ne.s32.totalorder %s72, %s86
      %p88 = scmp.eq.s32.totalorder %s25, 0
      %p89 = por %p87, %p88
      %s90 = ssub.s32 %s19, %s26
      %p91 = scmp.eq.s32.totalorder %s90, 0
      %s93 = sadd.s32 %s92, 1
      %s94 = scalar_select %p91, %s92, %s93
      %p97 = pneg %p91
      %p98 = scmp.eq.s32.totalorder %s19, 1
      %p99 = por %p97, %p98
      %p100 = scmp.ne.s32.totalorder %s92, %s95
      %p101 = scmp.eq.s32.totalorder %s19, 0
      %p102 = por %p100, %p101
      %p103 = scmp.ne.s32.totalorder %s92, %s95
      %p104 = scmp.eq.s32.totalorder %s24, 1
      %p105 = por %p103, %p104
      %p106 = scmp.ne.s32.totalorder %s95, %s96
      %p107 = scmp.eq.s32.totalorder %s24, 0
      %p108 = por %p106, %p107
      %p109 = scmp.ne.s32.totalorder %s95, %s96
      %p110 = scmp.eq.s32.totalorder %s25, 1
      %p111 = por %p109, %p110
      %p113 = scmp.ne.s32.totalorder %s96, %s112
      %p114 = scmp.eq.s32.totalorder %s25, 0
      %p115 = por %p113, %p114
      %s116 = ssub.s32 %s19, %s26
      %p117 = scmp.eq.s32.totalorder %s116, 0
      %s119 = sadd.s32 %s118, 1
      %s120 = scalar_select %p117, %s118, %s119
      %p123 = pneg %p117
      %p124 = scmp.eq.s32.totalorder %s19, 1
      %p125 = por %p123, %p124
      %p126 = scmp.ne.s32.totalorder %s118, %s121
      %p127 = scmp.eq.s32.totalorder %s19, 0
      %p128 = por %p126, %p127
      %p129 = scmp.ne.s32.totalorder %s118, %s121
      %p130 = scmp.eq.s32.totalorder %s24, 1
      %p131 = por %p129, %p130
      %p132 = scmp.ne.s32.totalorder %s121, %s122
      %p133 = scmp.eq.s32.totalorder %s24, 0
      %p134 = por %p132, %p133
      %p135 = scmp.ne.s32.totalorder %s121, %s122
      %p136 = scmp.eq.s32.totalorder %s25, 1
      %p137 = por %p135, %p136
      %p139 = scmp.ne.s32.totalorder %s122, %s138
      %p140 = scmp.eq.s32.totalorder %s25, 0
      %p141 = por %p139, %p140
      %s142 = ssub.s32 %s19, %s26
      %p143 = scmp.eq.s32.totalorder %s142, 0
      %s145 = sadd.s32 %s144, 1
      %s146 = scalar_select %p143, %s144, %s145
      %p149 = pneg %p143
      %p150 = scmp.eq.s32.totalorder %s19, 1
      %p151 = por %p149, %p150
      %p152 = scmp.ne.s32.totalorder %s144, %s147
      %p153 = scmp.eq.s32.totalorder %s19, 0
      %p154 = por %p152, %p153
      %p155 = scmp.ne.s32.totalorder %s144, %s147
      %p156 = scmp.eq.s32.totalorder %s24, 1
      %p157 = por %p155, %p156
      %p158 = scmp.ne.s32.totalorder %s147, %s148
      %p159 = scmp.eq.s32.totalorder %s24, 0
      %p160 = por %p158, %p159
      %p161 = scmp.ne.s32.totalorder %s147, %s148
      %p162 = scmp.eq.s32.totalorder %s25, 1
      %p163 = por %p161, %p162
      %p165 = scmp.ne.s32.totalorder %s148, %s164
      %p166 = scmp.eq.s32.totalorder %s25, 0
      %p167 = por %p165, %p166
      %p168 = scmp.le.s32.totalorder 1, %s19
      %p169 = scmp.lt.s32.totalorder %s19, 3
      %p170 = pnand %p168, %p169
      %p171 = pneg %p170
      // Predicated region
      $region9: #{tpu_custom_call.1} parent=5 // pred_check
        _
      $region10: #{tpu_custom_call.1} parent=5 // pred_check_branch
        %173 = sbr.rel (%p170) target = $region12
      $region11: #{tpu_custom_call.1} parent=5 // pred_region
        %s174 = ssub.s32 %s19, 1
        // Predicated region
        $region13: #{tpu_custom_call.1} parent=11 // pred_check
          %p175 = pneg %p40
        $region14: #{tpu_custom_call.1} parent=11 // pred_check_branch
          %177 = sbr.rel (%p175) target = $region16
        $region15: #{tpu_custom_call.1} parent=11 // pred_region
          %179 = vsyncadd [#allocation3], 0
          %s181 = sshll.u32 %s0, 4
          %s182 = int_to_ptr.hbm [resolvable:$true] %s181
          %s183 = sshll.u32 [#allocation2], 4
          %s184 = int_to_ptr.vmem [resolvable:$true] %s183
          %186 = dma.hbm_to_vmem [thread:$0]  %s182, 64, %s184, [#allocation3]
        $region16: #{tpu_custom_call.1} parent=11 // pred_fallthru
          _
        // Predicated region
        $region17: #{tpu_custom_call.1} parent=11 // pred_check
          %p187 = pneg %p61
        $region18: #{tpu_custom_call.1} parent=11 // pred_check_branch
          %189 = sbr.rel (%p187) target = $region20
        $region19: #{tpu_custom_call.1} parent=11 // pred_region
          %191 = vsyncadd [#allocation6], 0
          %s192 = sshll.u32 %s1, 4
          %s193 = int_to_ptr.hbm [resolvable:$true] %s192
          %s194 = sshll.u32 [#allocation5], 4
          %s195 = int_to_ptr.vmem [resolvable:$true] %s194
          %200 = dma.hbm_to_vmem [thread:$0]  %s193, 1024, %s195, [#allocation6], 128, 128, 8
        $region20: #{tpu_custom_call.1} parent=11 // pred_fallthru
          _
        // Predicated region
        $region21: #{tpu_custom_call.1} parent=11 // pred_check
          %p201 = pneg %p82
        $region22: #{tpu_custom_call.1} parent=11 // pred_check_branch
          %203 = sbr.rel (%p201) target = $region24
        $region23: #{tpu_custom_call.1} parent=11 // pred_region
          %205 = vsyncadd [#allocation6], 0
          %s207 = sshll.u32 %s2, 4
          %s208 = int_to_ptr.hbm [resolvable:$true] %s207
          %s209 = sshll.u32 [#allocation7], 4
          %s210 = int_to_ptr.vmem [resolvable:$true] %s209
          %212 = dma.hbm_to_vmem [thread:$0]  %s208, 32, %s210, [#allocation6]
        $region24: #{tpu_custom_call.1} parent=11 // pred_fallthru
          _
      $region12: #{tpu_custom_call.1} parent=5 // pred_fallthru
        _
      %p213 = scmp.lt.s32.totalorder %s19, 2
      // Predicated region
      $region25: #{tpu_custom_call.1} parent=5 // pred_check
        %p214 = pneg %p213
      $region26: #{tpu_custom_call.1} parent=5 // pred_check_branch
        %216 = sbr.rel (%p214) target = $region28
      $region27: #{tpu_custom_call.1} parent=5 // pred_region
        // Predicated region
        $region29: #{tpu_custom_call.1} parent=27 // pred_check
          %p217 = pneg %p102
        $region30: #{tpu_custom_call.1} parent=27 // pred_check_branch
          %219 = sbr.rel (%p217) target = $region32
        $region31: #{tpu_custom_call.1} parent=27 // pred_region
          %s220 = sand.u32 %s92, 1
          %s221 = scalar_lea.sflag [#allocation9], %s220
          %s222 = sand.u32 %s92, 1
          %s223 = smul.addr %s222, 128
          %s224 = scalar_lea.vmem [#allocation8], %s223
          %226 = vsyncadd %s221, 0
          %s227 = smul.addr %s19, 4
          %s228 = scalar_lea.hbm %s3, %s227
          %s229 = sshll.u32 %s228, 4
          %s230 = int_to_ptr.hbm [resolvable:$true] %s229
          %s231 = sshll.u32 %s224, 4
          %s232 = int_to_ptr.vmem [resolvable:$true] %s231
          %237 = dma.hbm_to_vmem [thread:$0]  %s230, 2048, %s232, %s221, 128, 64, 4
        $region32: #{tpu_custom_call.1} parent=27 // pred_fallthru
          _
        // Predicated region
        $region33: #{tpu_custom_call.1} parent=27 // pred_check
          %p238 = pneg %p128
        $region34: #{tpu_custom_call.1} parent=27 // pred_check_branch
          %240 = sbr.rel (%p238) target = $region36
        $region35: #{tpu_custom_call.1} parent=27 // pred_region
          %p241 = scmp.lt.s32.totalorder %s19, 1
          %s242 = scalar_select %p241, %s19, 1
          %s243 = scalar_lea.vmem %s4, %s242
        $region36: #{tpu_custom_call.1} parent=27 // pred_fallthru
          _
      $region28: #{tpu_custom_call.1} parent=5 // pred_fallthru
        _
      %p244 = scmp.le.s32.totalorder 1, %s19
      %p245 = scmp.lt.s32.totalorder %s19, 3
      %p246 = pnand %p244, %p245
      %p247 = pneg %p246
      // Predicated region
      $region37: #{tpu_custom_call.1} parent=5 // pred_check
        _
      $region38: #{tpu_custom_call.1} parent=5 // pred_check_branch
        %249 = sbr.rel (%p246) target = $region40
      $region39: #{tpu_custom_call.1} parent=5 // pred_region
        %s250 = ssub.s32 %s19, 1
        // Predicated region
        $region41: #{tpu_custom_call.1} parent=39 // pred_check
          %p251 = pneg %p40
        $region42: #{tpu_custom_call.1} parent=39 // pred_check_branch
          %253 = sbr.rel (%p251) target = $region44
        $region43: #{tpu_custom_call.1} parent=39 // pred_region
          %255 = dma.done [#allocation3], 64
        $region44: #{tpu_custom_call.1} parent=39 // pred_fallthru
          _
        // Predicated region
        $region45: #{tpu_custom_call.1} parent=39 // pred_check
          %p256 = pneg %p61
        $region46: #{tpu_custom_call.1} parent=39 // pred_check_branch
          %258 = sbr.rel (%p256) target = $region48
        $region47: #{tpu_custom_call.1} parent=39 // pred_region
          %260 = dma.done [#allocation6], 1024
        $region48: #{tpu_custom_call.1} parent=39 // pred_fallthru
          _
        // Predicated region
        $region49: #{tpu_custom_call.1} parent=39 // pred_check
          %p261 = pneg %p82
        $region50: #{tpu_custom_call.1} parent=39 // pred_check_branch
          %263 = sbr.rel (%p261) target = $region52
        $region51: #{tpu_custom_call.1} parent=39 // pred_region
          %265 = dma.done [#allocation6], 32
        $region52: #{tpu_custom_call.1} parent=39 // pred_fallthru
          _
        %s266 = sand.u32 %s95, 1
        %s267 = scalar_lea.sflag [#allocation9], %s266
        %s268 = sand.u32 %s95, 1
        %s269 = smul.addr %s268, 128
        %s270 = scalar_lea.vmem [#allocation8], %s269
        // Predicated region
        $region53: #{tpu_custom_call.1} parent=39 // pred_check
          %p271 = pneg %p108
        $region54: #{tpu_custom_call.1} parent=39 // pred_check_branch
          %273 = sbr.rel (%p271) target = $region56
        $region55: #{tpu_custom_call.1} parent=39 // pred_region
          %275 = dma.done %s267, 2048
        $region56: #{tpu_custom_call.1} parent=39 // pred_fallthru
          _
        %p276 = pneg %p40
        %p277 = pneg %p37
        %p278 = pneg %p61
        %p279 = pneg %p58
        %p280 = pneg %p82
        %p281 = pneg %p79
        %s282 = sand.u32 %s95, 1
        %s283 = scalar_lea.sflag [#allocation9], %s282
        %s284 = sand.u32 %s95, 1
        %s285 = smul.addr %s284, 128
        %s286 = scalar_lea.vmem [#allocation8], %s285
        %p287 = pneg %p108
        %p288 = pneg %p105
        %p289 = scmp.lt.s32.totalorder %s24, 1
        %s290 = scalar_select %p289, %s24, 1
        %s291 = scalar_lea.vmem %s4, %s290
        %p292 = pneg %p134
        %p293 = pneg %p131
        %p294 = pneg %p160
        %p295 = pneg %p157
        %s296 = sand.u32 %s147, 1
        %s297 = scalar_lea.sflag [#allocation4], %s296
        %s298 = sand.u32 %s147, 1
        %s299 = smul.addr %s298, 8
        %s300 = scalar_lea.vmem [#allocation10], %s299
        %p301 = scmp.lt.s32.totalorder %s24, 1
        %s302 = scalar_select %p301, %s24, 1
        %s303 = scalar_lea.vmem %s4, %s302
        %v305 = vld [vmem:[#allocation2] sm:$0xf]
        %v306 = vld [vmem:[#allocation5] sm:$0xff]
        %v307 = vld [vmem:[#allocation5 + $0x8] sm:$0xff]
        %v308 = vld [vmem:[#allocation5 + $0x10] sm:$0xff]
        %v309 = vld [vmem:[#allocation5 + $0x18] sm:$0xff]
        %v310 = vld [vmem:[#allocation5 + $0x20] sm:$0xff]
        %v311 = vld [vmem:[#allocation5 + $0x28] sm:$0xff]
        %v312 = vld [vmem:[#allocation5 + $0x30] sm:$0xff]
        %v313 = vld [vmem:[#allocation5 + $0x38] sm:$0xff]
        %v314 = vld [vmem:[#allocation7] sm:$0x3]
        %v316 = vperm.slane %v314, 0
        %v317 = vperm.slane %v314, 1
        %v328 = vunpack.c.l.b16 %v306
        %v329 = vunpack.c.h.b16 %v306
        %v330 = vunpack.c.l.b16 %v307
        %v331 = vunpack.c.h.b16 %v307
        %v332 = vunpack.c.l.b16 %v308
        %v333 = vunpack.c.h.b16 %v308
        %v334 = vunpack.c.l.b16 %v309
        %v335 = vunpack.c.h.b16 %v309
        %v336 = vunpack.c.l.b16 %v310
        %v337 = vunpack.c.h.b16 %v310
        %v338 = vunpack.c.l.b16 %v311
        %v339 = vunpack.c.h.b16 %v311
        %v340 = vunpack.c.l.b16 %v312
        %v341 = vunpack.c.h.b16 %v312
        %v342 = vunpack.c.l.b16 %v313
        %v343 = vunpack.c.h.b16 %v313
        %v344 = vpack.c.b16 %v330, %v328
        %v345 = vpack.c.b16 %v331, %v329
        %v346 = vpack.c.b16 %v334, %v332
        %v347 = vpack.c.b16 %v335, %v333
        %v348 = vpack.c.b16 %v338, %v336
        %v349 = vpack.c.b16 %v339, %v337
        %v350 = vpack.c.b16 %v342, %v340
        %v351 = vpack.c.b16 %v343, %v341
        %vm360 = vcmask 523264
        %v362 = vsel %vm360, %v305, 0
        %364 = vmatpush.bf16.msra.mxu0 0
        %365 = vmatpush.bf16.msra.mxu0 0
        %366 = vmatpush.bf16.msra.mxu0 0
        %367 = vmatpush.bf16.msra.mxu0 0
        %368 = vmatpush.bf16.msra.mxu0 %v350
        %369 = vmatpush.bf16.msra.mxu0 %v348
        %370 = vmatpush.bf16.msra.mxu0 %v346
        %371 = vmatpush.bf16.msra.mxu0 %v344
        %372 = vmatmul.bf16.gmra.mxu0 %v362
        %v373 = vpop.f32.mrf.mxu0
        %v374 = vadd.f32 %v316, %v373
        %v375 = vpop.f32.mrf.mxu0
        %376 = vdwg.mxu0
        %377 = vmatpush.bf16.msra.mxu0 0
        %378 = vmatpush.bf16.msra.mxu0 0
        %379 = vmatpush.bf16.msra.mxu0 0
        %380 = vmatpush.bf16.msra.mxu0 0
        %381 = vmatpush.bf16.msra.mxu0 %v351
        %382 = vmatpush.bf16.msra.mxu0 %v349
        %383 = vmatpush.bf16.msra.mxu0 %v347
        %384 = vmatpush.bf16.msra.mxu0 %v345
        %385 = vmatmul.bf16.gmra.mxu0 %v362
        %v386 = vpop.f32.mrf.mxu0
        %v387 = vadd.f32 %v317, %v386
        %v388 = vpop.f32.mrf.mxu0
        %389 = vdwg.mxu0
        %v390 = vxor.u32 %v374, 2147483648
        %v391 = vxor.u32 %v387, 2147483648
        %v392 = vmul.f32 %v390, 1.442695
        %v393 = vpow.pop %v392
        %v394 = vmul.f32 %v391, 1.442695
        %v395 = vpow.pop %v394
        %v396 = vadd.f32 %v393, 1.0
        %v397 = vadd.f32 %v395, 1.0
        %v398 = vrcp.pop %v396
        %v399 = vmul.f32 %v396, %v398
        %v400 = vsub.f32 1.0, %v399
        %v401 = vmul.f32 %v398, %v400
        %v402 = vadd.f32 %v398, %v401
        %vm403 = vweird.f32 %v396
        %vm404 = vweird.f32 %v398
        %vm405 = vmor %vm403, %vm404
        %v406 = vsel %vm405, %v398, %v402
        %v407 = vand.u32 2147483647, %v396
        %vm408 = vcmp.eq.f32.partialorder %v407, 8.507059e+37
        %v409 = vand.u32 %v396, 2147483648
        %v410 = vor.u32 1.1754944e-38, %v409
        %v411 = vsel %vm408, %v410, %v406
        %v412 = vmul.f32 1.0, %v411
        %v413 = vrcp.pop %v397
        %v414 = vmul.f32 %v397, %v413
        %v415 = vsub.f32 1.0, %v414
        %v416 = vmul.f32 %v413, %v415
        %v417 = vadd.f32 %v413, %v416
        %vm418 = vweird.f32 %v397
        %vm419 = vweird.f32 %v413
        %vm420 = vmor %vm418, %vm419
        %v421 = vsel %vm420, %v413, %v417
        %v422 = vand.u32 2147483647, %v397
        %vm423 = vcmp.eq.f32.partialorder %v422, 8.507059e+37
        %v424 = vand.u32 %v397, 2147483648
        %v425 = vor.u32 1.1754944e-38, %v424
        %v426 = vsel %vm423, %v425, %v421
        %v427 = vmul.f32 1.0, %v426
        %v428 = vmul.f32 %v374, %v412
        %v429 = vmul.f32 %v387, %v427
        %v430 = vpack.c.bf16 %v428, %v428
        %v431 = vpack.c.bf16 %v429, %v429
        %v432 = vld [vmem:[%s270] sm:$0xf]
        %v433 = vld [vmem:[%s270 + $0x4] sm:$0xf]
        %v434 = vld [vmem:[%s270 + $0x8] sm:$0xf]
        %v435 = vld [vmem:[%s270 + $0xc] sm:$0xf]
        %v436 = vld [vmem:[%s270 + $0x10] sm:$0xf]
        %v437 = vld [vmem:[%s270 + $0x14] sm:$0xf]
        %v438 = vld [vmem:[%s270 + $0x18] sm:$0xf]
        %v439 = vld [vmem:[%s270 + $0x1c] sm:$0xf]
        %v440 = vld [vmem:[%s270 + $0x20] sm:$0xf]
        %v441 = vld [vmem:[%s270 + $0x24] sm:$0xf]
        %v442 = vld [vmem:[%s270 + $0x28] sm:$0xf]
        %v443 = vld [vmem:[%s270 + $0x2c] sm:$0xf]
        %v444 = vld [vmem:[%s270 + $0x30] sm:$0xf]
        %v445 = vld [vmem:[%s270 + $0x34] sm:$0xf]
        %v446 = vld [vmem:[%s270 + $0x38] sm:$0xf]
        %v447 = vld [vmem:[%s270 + $0x3c] sm:$0xf]
        %v448 = vld [vmem:[%s270 + $0x40] sm:$0xf]
        %v449 = vld [vmem:[%s270 + $0x44] sm:$0xf]
        %v450 = vld [vmem:[%s270 + $0x48] sm:$0xf]
        %v451 = vld [vmem:[%s270 + $0x4c] sm:$0xf]
        %v452 = vld [vmem:[%s270 + $0x50] sm:$0xf]
        %v453 = vld [vmem:[%s270 + $0x54] sm:$0xf]
        %v454 = vld [vmem:[%s270 + $0x58] sm:$0xf]
        %v455 = vld [vmem:[%s270 + $0x5c] sm:$0xf]
        %v456 = vld [vmem:[%s270 + $0x60] sm:$0xf]
        %v457 = vld [vmem:[%s270 + $0x64] sm:$0xf]
        %v458 = vld [vmem:[%s270 + $0x68] sm:$0xf]
        %v459 = vld [vmem:[%s270 + $0x6c] sm:$0xf]
        %v460 = vld [vmem:[%s270 + $0x70] sm:$0xf]
        %v461 = vld [vmem:[%s270 + $0x74] sm:$0xf]
        %v462 = vld [vmem:[%s270 + $0x78] sm:$0xf]
        %v463 = vld [vmem:[%s270 + $0x7c] sm:$0xf]
        %v464 = vld [vmem:[%s303] sm:$0x1]
        %v466 = vperm.slane %v464, 0
        %v500 = vunpack.c.l.b16 %v432
        %v501 = vunpack.c.l.b16 %v433
        %v502 = vunpack.c.l.b16 %v434
        %v503 = vunpack.c.l.b16 %v435
        %v504 = vunpack.c.l.b16 %v436
        %v505 = vunpack.c.l.b16 %v437
        %v506 = vunpack.c.l.b16 %v438
        %v507 = vunpack.c.l.b16 %v439
        %v508 = vunpack.c.l.b16 %v440
        %v509 = vunpack.c.l.b16 %v441
        %v510 = vunpack.c.l.b16 %v442
        %v511 = vunpack.c.l.b16 %v443
        %v512 = vunpack.c.l.b16 %v444
        %v513 = vunpack.c.l.b16 %v445
        %v514 = vunpack.c.l.b16 %v446
        %v515 = vunpack.c.l.b16 %v447
        %v516 = vunpack.c.l.b16 %v448
        %v517 = vunpack.c.l.b16 %v449
        %v518 = vunpack.c.l.b16 %v450
        %v519 = vunpack.c.l.b16 %v451
        %v520 = vunpack.c.l.b16 %v452
        %v521 = vunpack.c.l.b16 %v453
        %v522 = vunpack.c.l.b16 %v454
        %v523 = vunpack.c.l.b16 %v455
        %v524 = vunpack.c.l.b16 %v456
        %v525 = vunpack.c.l.b16 %v457
        %v526 = vunpack.c.l.b16 %v458
        %v527 = vunpack.c.l.b16 %v459
        %v528 = vunpack.c.l.b16 %v460
        %v529 = vunpack.c.l.b16 %v461
        %v530 = vunpack.c.l.b16 %v462
        %v531 = vunpack.c.l.b16 %v463
        %v532 = vpack.c.b16 %v501, %v500
        %v533 = vpack.c.b16 %v503, %v502
        %v534 = vpack.c.b16 %v505, %v504
        %v535 = vpack.c.b16 %v507, %v506
        %v536 = vpack.c.b16 %v509, %v508
        %v537 = vpack.c.b16 %v511, %v510
        %v538 = vpack.c.b16 %v513, %v512
        %v539 = vpack.c.b16 %v515, %v514
        %v540 = vpack.c.b16 %v517, %v516
        %v541 = vpack.c.b16 %v519, %v518
        %v542 = vpack.c.b16 %v521, %v520
        %v543 = vpack.c.b16 %v523, %v522
        %v544 = vpack.c.b16 %v525, %v524
        %v545 = vpack.c.b16 %v527, %v526
        %v546 = vpack.c.b16 %v529, %v528
        %v547 = vpack.c.b16 %v531, %v530
        %564 = vmatpush.bf16.msra.mxu0 %v539
        %565 = vmatpush.bf16.msra.mxu0 %v538
        %566 = vmatpush.bf16.msra.mxu0 %v537
        %567 = vmatpush.bf16.msra.mxu0 %v536
        %568 = vmatpush.bf16.msra.mxu0 %v535
        %569 = vmatpush.bf16.msra.mxu0 %v534
        %570 = vmatpush.bf16.msra.mxu0 %v533
        %571 = vmatpush.bf16.msra.mxu0 %v532
        %572 = vmatmul.bf16.gmra.mxu0 %v430
        %v573 = vpop.f32.mrf.mxu0
        %v574 = vadd.f32 %v466, %v573
        %v575 = vpop.f32.mrf.mxu0
        %576 = vdwg.mxu0
        %577 = vmatpush.bf16.msra.mxu0 %v547
        %578 = vmatpush.bf16.msra.mxu0 %v546
        %579 = vmatpush.bf16.msra.mxu0 %v545
        %580 = vmatpush.bf16.msra.mxu0 %v544
        %581 = vmatpush.bf16.msra.mxu0 %v543
        %582 = vmatpush.bf16.msra.mxu0 %v542
        %583 = vmatpush.bf16.msra.mxu0 %v541
        %584 = vmatpush.bf16.msra.mxu0 %v540
        %585 = vmatmul.bf16.gmra.mxu0 %v431
        %v586 = vpop.f32.mrf.mxu0
        %v587 = vadd.f32 %v574, %v586
        %v588 = vpop.f32.mrf.mxu0
        %589 = vdwg.mxu0
        %590 = vst [vmem:[%s300] sm:$0xff] %v587
        %s591 = sand.u32 %s147, 1
        %s592 = scalar_lea.sflag [#allocation4], %s591
        %s593 = sand.u32 %s147, 1
        %s594 = smul.addr %s593, 8
        %s595 = scalar_lea.vmem [#allocation10], %s594
        // Predicated region
        $region57: #{tpu_custom_call.1} parent=39 // pred_check
          %p596 = pneg %p157
        $region58: #{tpu_custom_call.1} parent=39 // pred_check_branch
          %598 = sbr.rel (%p596) target = $region60
        $region59: #{tpu_custom_call.1} parent=39 // pred_region
          %600 = vsyncadd %s592, 0
          %s601 = smul.addr %s24, 8
          %s602 = scalar_lea.hbm %s5, %s601
          %s604 = sshll.u32 %s595, 4
          %s605 = int_to_ptr.vmem [resolvable:$true] %s604
          %s606 = sshll.u32 %s602, 4
          %s607 = int_to_ptr.hbm [resolvable:$true] %s606
          %609 = dma.vmem_to_hbm [thread:$0]  %s605, 128, %s607, %s592
        $region60: #{tpu_custom_call.1} parent=39 // pred_fallthru
          _
      $region40: #{tpu_custom_call.1} parent=5 // pred_fallthru
        _
      %p610 = scmp.le.s32.totalorder 2, %s19
      // Predicated region
      $region61: #{tpu_custom_call.1} parent=5 // pred_check
        %p611 = pneg %p610
      $region62: #{tpu_custom_call.1} parent=5 // pred_check_branch
        %613 = sbr.rel (%p611) target = $region64
      $region63: #{tpu_custom_call.1} parent=5 // pred_region
        %s614 = ssub.s32 %s19, 2
        // Predicated region
        $region65: #{tpu_custom_call.1} parent=63 // pred_check
          %p615 = pneg %p163
        $region66: #{tpu_custom_call.1} parent=63 // pred_check_branch
          %617 = sbr.rel (%p615) target = $region68
        $region67: #{tpu_custom_call.1} parent=63 // pred_region
          %s618 = sand.u32 %s148, 1
          %s619 = scalar_lea.sflag [#allocation4], %s618
          %s620 = sand.u32 %s148, 1
          %s621 = smul.addr %s620, 8
          %s622 = scalar_lea.vmem [#allocation10], %s621
          %624 = dma.done %s619, 128
        $region68: #{tpu_custom_call.1} parent=63 // pred_fallthru
          _
      $region64: #{tpu_custom_call.1} parent=5 // pred_fallthru
        _
    $region6: #{tpu_custom_call.1} parent=1 // loop_footer
      %s23 = sadd.s32 1, %s19
    $region7: #{tpu_custom_call.1} parent=1 // loop_footer_branch
      %18 = sbr.rel target = $region3
    $region8: #{tpu_custom_call.1} parent=1 // loop_exit
      _
    %625 = vsyncpa [#allocation3], 1
    %s626 = scalar_lea.sflag [#allocation3], 1
    %627 = vsyncpa %s626, 1
    %628 = vsyncpa [#allocation6], 1
    %629 = vsyncpa [#allocation9], 1
    %s630 = scalar_lea.sflag [#allocation9], 1
    %631 = vsyncpa %s630, 1
    %632 = vsyncpa [#allocation4], 1
    %s633 = scalar_lea.sflag [#allocation4], 1
    %634 = vsyncpa %s633, 1

</llo_original>
